<compile_context>
chip_gen: v7x
topology: tpu7x:2x2x1
jax: 0.10.0
libtpu: 0.0.40
codegen_flags: <defaults>
</compile_context>

<pallas_src>
import functools

import jax
import jax.numpy as jnp
import numpy as np
from jax.experimental import pallas as pl
from jax.experimental.pallas import tpu as pltpu

# "Module parameters" (deterministic, defined in-script). The PyTorch forward
# never actually uses them (uncontact_margin is dead code, loss_affo2hand
# stays 0), so they do not affect the result.
W_AFFO2HAND = 1.0
W_AFFO2AFFO = 1.0
UNCONTACT_MARGIN = 1.0

_LANE = 128
_SUBLANE = 8
_NCORES = 2                       # leading parallel grid axis (v7x megacore)
_TARGET_BLOCK_BYTES = 2 * 1024 * 1024


def _affodist_kernel(hm_ref, hc_ref, hh_ref, out_ref, *,
                     num_hands, hw_valid, hw_pad, tb):
    """One grid step = TB (batch*time) rows.

    hm_ref : VMEM (TB, HWp)     f32   -- heatmap logits (lane-flattened spatial)
    hc_ref : VMEM (TB, M)       f32   -- hand_contacts as {0,1}
    hh_ref : VMEM (TB, M*HWp)   int8  -- {0,1} hand heatmaps, per-hand lane slabs
    out_ref: VMEM (4, 8, HWp)   f32   -- per-core vector accumulator
              [0]=contact_sum [1]=contact_cnt [2]=uncontact_sum [3]=uncontact_cnt
    """
    step = pl.program_id(1)

    @pl.when(step == 0)
    def _init():
        out_ref[...] = jnp.zeros_like(out_ref)

    x = hm_ref[...]                                   # (TB, HWp) logits
    hc = hc_ref[...]                                  # (TB, M)   {0,1}

    cmask = jnp.zeros_like(x)                         # OR of contacted-hand heatmaps
    umask = jnp.zeros_like(x)                         # OR of uncontacted-hand heatmaps
    has_c = jnp.zeros((x.shape[0], 1), jnp.float32)   # any contacted hand exists
    has_u = jnp.zeros((x.shape[0], 1), jnp.float32)   # any uncontacted hand exists
    for m in range(num_hands):
        cf = hc[:, m:m + 1]                                              # (TB, 1)
        hhm = hh_ref[:, m * hw_pad:(m + 1) * hw_pad].astype(jnp.float32)  # (TB, HWp)
        cmask = jnp.maximum(cmask, hhm * cf)
        umask = jnp.maximum(umask, hhm * (1.0 - cf))
        has_c = jnp.maximum(has_c, cf)
        has_u = jnp.maximum(has_u, 1.0 - cf)

    # Numerically-stable BCE-with-logits terms (matches torch formulation).
    log1pexp = jnp.log1p(jnp.exp(-jnp.abs(x)))
    sp_pos = jnp.maximum(x, 0.0) + log1pexp   # softplus(x)   -> target 0
    sp_neg = sp_pos - x                       # softplus(-x)  -> target 1

    # Per-pixel multiplicities reproducing the ragged list-append semantics.
    w_c = has_c * cmask
    w_u = has_c * (1.0 - cmask) + has_u * umask

    if hw_valid != hw_pad:
        # Zero out lane-padding columns (only generated when H*W % 128 != 0).
        valid = (jax.lax.broadcasted_iota(jnp.int32, (1, hw_pad), 1)
                 < hw_valid).astype(jnp.float32)
        w_c = w_c * valid
        w_u = w_u * valid

    def accumulate(idx, vals):
        # (TB, HWp) -> (TB//8, 8, HWp): layout-preserving reshape; the sum over
        # the leading axis lowers to plain vector adds (no per-step XLU reduce).
        reduced = vals.reshape(tb // _SUBLANE, _SUBLANE, hw_pad).sum(axis=0)
        out_ref[idx] = out_ref[idx] + reduced

    accumulate(0, w_c * sp_neg)
    accumulate(1, w_c)
    accumulate(2, w_u * sp_pos)
    accumulate(3, w_u)


def _round_up(x, m):
    return ((x + m - 1) // m) * m


def affodist_loss(heatmaps, hand_boxes, hand_contacts, hand_heatmaps):
    """JAX/Pallas equivalent of AffoDistLoss.forward. hand_boxes is unused."""
    del hand_boxes  # unused by the PyTorch forward as well
    N, T, H, W = heatmaps.shape
    M = hand_contacts.shape[-1]
    B = N * T
    HW = H * W
    HWp = _round_up(HW, _LANE)        # lane-padded per-hand spatial size

    # ---- choose batch tile TB (multiple of 32 for the int8 block) ----
    bytes_per_row = HWp * 4 + M * HWp * 1 + _LANE * 4   # hm f32 + hh i8 + hc (VMEM-padded)
    TB = _TARGET_BLOCK_BYTES // bytes_per_row
    TB = max(32, min(1024, int(TB)))
    TB -= TB % 32
    TB = min(TB, _round_up(B, 32))    # don't over-tile tiny inputs
    TB = max(TB, 32)

    steps_total = -(-B // TB)                      # cdiv
    spc = -(-steps_total // _NCORES)               # steps per core
    B_pad = _NCORES * spc * TB

    # ---- lane-dense, dtype-lean layouts (all padding contributes zero) ----
    hm = heatmaps.reshape(B, HW).astype(jnp.float32)
    hh = hand_heatmaps.reshape(B, M, HW).astype(jnp.int8)
    hc = hand_contacts.reshape(B, M).astype(jnp.float32)
    if HWp != HW:
        hm = jnp.pad(hm, ((0, 0), (0, HWp - HW)))
        hh = jnp.pad(hh, ((0, 0), (0, 0), (0, HWp - HW)))
    hh = hh.reshape(B, M * HWp)
    if B_pad != B:
        hm = jnp.pad(hm, ((0, B_pad - B), (0, 0)))
        hh = jnp.pad(hh, ((0, B_pad - B), (0, 0)))
        hc = jnp.pad(hc, ((0, B_pad - B), (0, 0)))

    kernel = functools.partial(_affodist_kernel, num_hands=M,
                               hw_valid=HW, hw_pad=HWp, tb=TB)

    acc = pl.pallas_call(
        kernel,
        out_shape=jax.ShapeDtypeStruct((_NCORES, 4, _SUBLANE, HWp), jnp.float32),
        grid=(_NCORES, spc),
        in_specs=[
            pl.BlockSpec((TB, HWp), lambda c, i: (c * spc + i, 0)),
            pl.BlockSpec((TB, M), lambda c, i: (c * spc + i, 0)),
            pl.BlockSpec((TB, M * HWp), lambda c, i: (c * spc + i, 0)),
        ],
        out_specs=pl.BlockSpec((None, 4, _SUBLANE, HWp), lambda c, i: (c, 0, 0, 0)),
        compiler_params=pltpu.CompilerParams(
            dimension_semantics=("parallel", "arbitrary"),
            vmem_limit_bytes=32 * 1024 * 1024,
        ),
    )(hm, hc, hh)

    sums = jnp.sum(acc, axis=(0, 2, 3))   # -> [c_sum, c_cnt, u_sum, u_cnt]
    # Note: division by zero (no contacted / no uncontacted hand anywhere) would
    # also fail in the PyTorch reference (empty torch.cat) -> matched behavior.
    contact_loss = sums[0] / sums[1]
    uncontact_loss = sums[2] / sums[3]
    loss = contact_loss + uncontact_loss
    return dict(loss=loss, contact_loss=contact_loss, uncontact_loss=uncontact_loss)


def _reference_numpy(heatmaps, hand_contacts, hand_heatmaps):
    """Direct numpy transliteration of the PyTorch forward (for verification)."""
    heatmaps = np.asarray(heatmaps, dtype=np.float64)
    hand_contacts = np.asarray(hand_contacts, dtype=bool)
    hand_heatmaps = np.asarray(hand_heatmaps, dtype=bool)
    N, T, H, W = heatmaps.shape
    contacts, uncontacts = [], []
    for b in range(N):
        for t in range(T):
            hm = heatmaps[b, t]
            hcon = hand_contacts[b, t]
            hh = hand_heatmaps[b, t]
            c_hh = hh[hcon]
            u_hh = hh[~hcon]
            if c_hh.size > 0:
                cmask = c_hh.any(axis=0)
                contacts.append(hm[cmask])
                uncontacts.append(hm[~cmask])
            if u_hh.size > 0:
                umask = u_hh.any(axis=0)
                uncontacts.append(hm[umask])
    contacts = np.concatenate(contacts)
    uncontacts = np.concatenate(uncontacts)

    def softplus(v):
        return np.maximum(v, 0.0) + np.log1p(np.exp(-np.abs(v)))

    contact_loss = softplus(-contacts).mean()      # BCEWithLogits(target=1)
    uncontact_loss = softplus(uncontacts).mean()   # BCEWithLogits(target=0)
    return contact_loss + uncontact_loss, contact_loss, uncontact_loss


if __name__ == "__main__":
    N, T, M, H, W = 2, 4, 3, 16, 16
    key = jax.random.PRNGKey(0)
    k1, k2, k3, k4 = jax.random.split(key, 4)

    heatmaps = jax.random.normal(k1, (N, T, H, W), dtype=jnp.float32)
    hand_contacts = jax.random.bernoulli(k2, 0.5, (N, T, M))
    # Guarantee both contacted and uncontacted hands exist somewhere.
    hand_contacts = hand_contacts.at[0, 0, 0].set(True).at[0, 0, 1].set(False)
    hand_heatmaps = jax.random.bernoulli(k3, 0.3, (N, T, M, H, W))
    hand_boxes = jax.random.uniform(k4, (N, T, M, 4), dtype=jnp.float32)  # unused

    out = affodist_loss(heatmaps, hand_boxes, hand_contacts, hand_heatmaps)
    jax.block_until_ready(out["loss"])

    ref_loss, ref_c, ref_u = _reference_numpy(heatmaps, hand_contacts, hand_heatmaps)
    np.testing.assert_allclose(float(out["contact_loss"]), ref_c, rtol=1e-4, atol=1e-5)
    np.testing.assert_allclose(float(out["uncontact_loss"]), ref_u, rtol=1e-4, atol=1e-5)
    np.testing.assert_allclose(float(out["loss"]), ref_loss, rtol=1e-4, atol=1e-5)

    print("KERNEL_OK")
</pallas_src>

<mosaic_0001>
module attributes {stable_mosaic.version = 11 : i64} {
  func.func @_affodist_kernel(%arg0: i32, %arg1: i32, %arg2: memref<32x256xf32, #tpu.memory_space<vmem>>, %arg3: memref<32x3xf32, #tpu.memory_space<vmem>>, %arg4: memref<32x768xi8, #tpu.memory_space<vmem>>, %arg5: memref<1x4x8x256xf32, #tpu.memory_space<vmem>>) attributes {dimension_semantics = [#tpu.dimension_semantics<parallel>, #tpu.dimension_semantics<arbitrary>], iteration_bounds = array<i64: 2, 1>, scalar_prefetch = 0 : i64, scratch_operands = 0 : i64, tpu.core_type = #tpu.core_type<tc>, window_params = [{transform_indices = @transform_0, window_bounds = array<i64: 32, 256>}, {transform_indices = @transform_1, window_bounds = array<i64: 32, 3>}, {transform_indices = @transform_2, window_bounds = array<i64: 32, 768>}, {transform_indices = @transform_3, window_bounds = array<i64: 1, 4, 8, 256>}]} {
    %c0_i32 = arith.constant 0 : i32
    %0 = arith.cmpi eq, %arg1, %c0_i32 : i32
    %1 = arith.extui %0 : i1 to i32
    %c0_i32_0 = arith.constant 0 : i32
    %2 = arith.cmpi ne, %1, %c0_i32_0 : i32
    scf.if %2 {
      %cst_53 = arith.constant 0.000000e+00 : f32
      %106 = vector.broadcast %cst_53 : f32 to vector<4x8x256xf32>
      %c0_54 = arith.constant 0 : index
      %c0_55 = arith.constant 0 : index
      %c0_56 = arith.constant 0 : index
      %c0_57 = arith.constant 0 : index
      %107 = vector.load %arg5[%c0_54, %c0_55, %c0_56, %c0_57] : memref<1x4x8x256xf32, #tpu.memory_space<vmem>>, vector<1x4x8x256xf32>
      %108 = vector.shape_cast %107 : vector<1x4x8x256xf32> to vector<4x8x256xf32>
      %109 = vector.shape_cast %106 : vector<4x8x256xf32> to vector<1x4x8x256xf32>
      tpu.vector_store %arg5[%c0_54, %c0_55, %c0_56, %c0_57], %109 {strides = array<i32>} : memref<1x4x8x256xf32, #tpu.memory_space<vmem>>, vector<1x4x8x256xf32>,
    } else {
    }
    %c0 = arith.constant 0 : index
    %c0_1 = arith.constant 0 : index
    %3 = vector.load %arg2[%c0, %c0_1] : memref<32x256xf32, #tpu.memory_space<vmem>>, vector<32x256xf32>
    %c0_2 = arith.constant 0 : index
    %c0_3 = arith.constant 0 : index
    %4 = vector.load %arg3[%c0_2, %c0_3] : memref<32x3xf32, #tpu.memory_space<vmem>>, vector<32x3xf32>
    %cst = arith.constant 0.000000e+00 : f32
    %5 = vector.broadcast %cst : f32 to vector<32x256xf32>
    %cst_4 = arith.constant 0.000000e+00 : f32
    %6 = vector.broadcast %cst_4 : f32 to vector<32x256xf32>
    %cst_5 = arith.constant 0.000000e+00 : f32
    %7 = vector.broadcast %cst_5 : f32 to vector<32x1xf32>
    %cst_6 = arith.constant 0.000000e+00 : f32
    %8 = vector.broadcast %cst_6 : f32 to vector<32x1xf32>
    %9 = vector.extract_strided_slice %4 {offsets = [0, 0], sizes = [32, 1], strides = [1, 1]} : vector<32x3xf32> to vector<32x1xf32>
    %c0_7 = arith.constant 0 : index
    %c0_8 = arith.constant 0 : index
    %10 = vector.load %arg4[%c0_7, %c0_8] : memref<32x768xi8, #tpu.memory_space<vmem>>, vector<32x256xi8>
    %11 = arith.sitofp %10 : vector<32x256xi8> to vector<32x256xf32>
    %12 = vector.broadcast %9 : vector<32x1xf32> to vector<32x256xf32>
    %13 = arith.mulf %11, %12 : vector<32x256xf32>
    %14 = arith.maximumf %5, %13 : vector<32x256xf32>
    %cst_9 = arith.constant 1.000000e+00 : f32
    %15 = vector.broadcast %cst_9 : f32 to vector<32x1xf32>
    %16 = arith.subf %15, %9 : vector<32x1xf32>
    %17 = vector.broadcast %16 : vector<32x1xf32> to vector<32x256xf32>
    %18 = arith.mulf %11, %17 : vector<32x256xf32>
    %19 = arith.maximumf %6, %18 : vector<32x256xf32>
    %20 = arith.maximumf %7, %9 : vector<32x1xf32>
    %cst_10 = arith.constant 1.000000e+00 : f32
    %21 = vector.broadcast %cst_10 : f32 to vector<32x1xf32>
    %22 = arith.subf %21, %9 : vector<32x1xf32>
    %23 = arith.maximumf %8, %22 : vector<32x1xf32>
    %24 = vector.extract_strided_slice %4 {offsets = [0, 1], sizes = [32, 1], strides = [1, 1]} : vector<32x3xf32> to vector<32x1xf32>
    %c0_11 = arith.constant 0 : index
    %c256 = arith.constant 256 : index
    %25 = vector.load %arg4[%c0_11, %c256] : memref<32x768xi8, #tpu.memory_space<vmem>>, vector<32x256xi8>
    %26 = arith.sitofp %25 : vector<32x256xi8> to vector<32x256xf32>
    %27 = vector.broadcast %24 : vector<32x1xf32> to vector<32x256xf32>
    %28 = arith.mulf %26, %27 : vector<32x256xf32>
    %29 = arith.maximumf %14, %28 : vector<32x256xf32>
    %cst_12 = arith.constant 1.000000e+00 : f32
    %30 = vector.broadcast %cst_12 : f32 to vector<32x1xf32>
    %31 = arith.subf %30, %24 : vector<32x1xf32>
    %32 = vector.broadcast %31 : vector<32x1xf32> to vector<32x256xf32>
    %33 = arith.mulf %26, %32 : vector<32x256xf32>
    %34 = arith.maximumf %19, %33 : vector<32x256xf32>
    %35 = arith.maximumf %20, %24 : vector<32x1xf32>
    %cst_13 = arith.constant 1.000000e+00 : f32
    %36 = vector.broadcast %cst_13 : f32 to vector<32x1xf32>
    %37 = arith.subf %36, %24 : vector<32x1xf32>
    %38 = arith.maximumf %23, %37 : vector<32x1xf32>
    %39 = vector.extract_strided_slice %4 {offsets = [0, 2], sizes = [32, 1], strides = [1, 1]} : vector<32x3xf32> to vector<32x1xf32>
    %c0_14 = arith.constant 0 : index
    %c512 = arith.constant 512 : index
    %40 = vector.load %arg4[%c0_14, %c512] : memref<32x768xi8, #tpu.memory_space<vmem>>, vector<32x256xi8>
    %41 = arith.sitofp %40 : vector<32x256xi8> to vector<32x256xf32>
    %42 = vector.broadcast %39 : vector<32x1xf32> to vector<32x256xf32>
    %43 = arith.mulf %41, %42 : vector<32x256xf32>
    %44 = arith.maximumf %29, %43 : vector<32x256xf32>
    %cst_15 = arith.constant 1.000000e+00 : f32
    %45 = vector.broadcast %cst_15 : f32 to vector<32x1xf32>
    %46 = arith.subf %45, %39 : vector<32x1xf32>
    %47 = vector.broadcast %46 : vector<32x1xf32> to vector<32x256xf32>
    %48 = arith.mulf %41, %47 : vector<32x256xf32>
    %49 = arith.maximumf %34, %48 : vector<32x256xf32>
    %50 = arith.maximumf %35, %39 : vector<32x1xf32>
    %cst_16 = arith.constant 1.000000e+00 : f32
    %51 = vector.broadcast %cst_16 : f32 to vector<32x1xf32>
    %52 = arith.subf %51, %39 : vector<32x1xf32>
    %53 = arith.maximumf %38, %52 : vector<32x1xf32>
    %54 = math.absf %3 : vector<32x256xf32>
    %cst_17 = arith.constant 0.000000e+00 : f32
    %55 = vector.broadcast %cst_17 : f32 to vector<32x256xf32>
    %56 = arith.subf %55, %54 : vector<32x256xf32>
    %57 = math.exp %56 : vector<32x256xf32>
    %58 = math.log1p %57 : vector<32x256xf32>
    %cst_18 = arith.constant 0.000000e+00 : f32
    %59 = vector.broadcast %cst_18 : f32 to vector<32x256xf32>
    %60 = arith.maximumf %3, %59 : vector<32x256xf32>
    %61 = arith.addf %60, %58 : vector<32x256xf32>
    %62 = arith.subf %61, %3 : vector<32x256xf32>
    %63 = vector.broadcast %50 : vector<32x1xf32> to vector<32x256xf32>
    %64 = arith.mulf %63, %44 : vector<32x256xf32>
    %cst_19 = arith.constant 1.000000e+00 : f32
    %65 = vector.broadcast %cst_19 : f32 to vector<32x256xf32>
    %66 = arith.subf %65, %44 : vector<32x256xf32>
    %67 = vector.broadcast %50 : vector<32x1xf32> to vector<32x256xf32>
    %68 = arith.mulf %67, %66 : vector<32x256xf32>
    %69 = vector.broadcast %53 : vector<32x1xf32> to vector<32x256xf32>
    %70 = arith.mulf %69, %49 : vector<32x256xf32>
    %71 = arith.addf %68, %70 : vector<32x256xf32>
    %72 = arith.mulf %64, %62 : vector<32x256xf32>
    %73 = vector.shape_cast %72 : vector<32x256xf32> to vector<4x8x256xf32>
    %cst_20 = arith.constant dense<0.000000e+00> : vector<8x256xf32>
    %74 = vector.multi_reduction <add>, %73, %cst_20 [0] : vector<4x8x256xf32> to vector<8x256xf32>
    %c0_21 = arith.constant 0 : index
    %c0_22 = arith.constant 0 : index
    %c0_23 = arith.constant 0 : index
    %c0_24 = arith.constant 0 : index
    %75 = vector.load %arg5[%c0_21, %c0_22, %c0_23, %c0_24] : memref<1x4x8x256xf32, #tpu.memory_space<vmem>>, vector<1x1x8x256xf32>
    %76 = vector.shape_cast %75 : vector<1x1x8x256xf32> to vector<8x256xf32>
    %77 = arith.addf %76, %74 : vector<8x256xf32>
    %c0_25 = arith.constant 0 : index
    %c0_26 = arith.constant 0 : index
    %c0_27 = arith.constant 0 : index
    %c0_28 = arith.constant 0 : index
    %78 = vector.load %arg5[%c0_25, %c0_26, %c0_27, %c0_28] : memref<1x4x8x256xf32, #tpu.memory_space<vmem>>, vector<1x1x8x256xf32>
    %79 = vector.shape_cast %78 : vector<1x1x8x256xf32> to vector<8x256xf32>
    %80 = vector.shape_cast %77 : vector<8x256xf32> to vector<1x1x8x256xf32>
    tpu.vector_store %arg5[%c0_25, %c0_26, %c0_27, %c0_28], %80 {strides = array<i32>} : memref<1x4x8x256xf32, #tpu.memory_space<vmem>>, vector<1x1x8x256xf32>,
    %81 = vector.shape_cast %64 : vector<32x256xf32> to vector<4x8x256xf32>
    %cst_29 = arith.constant dense<0.000000e+00> : vector<8x256xf32>
    %82 = vector.multi_reduction <add>, %81, %cst_29 [0] : vector<4x8x256xf32> to vector<8x256xf32>
    %c0_30 = arith.constant 0 : index
    %c1 = arith.constant 1 : index
    %c0_31 = arith.constant 0 : index
    %c0_32 = arith.constant 0 : index
    %83 = vector.load %arg5[%c0_30, %c1, %c0_31, %c0_32] : memref<1x4x8x256xf32, #tpu.memory_space<vmem>>, vector<1x1x8x256xf32>
    %84 = vector.shape_cast %83 : vector<1x1x8x256xf32> to vector<8x256xf32>
    %85 = arith.addf %84, %82 : vector<8x256xf32>
    %c0_33 = arith.constant 0 : index
    %c1_34 = arith.constant 1 : index
    %c0_35 = arith.constant 0 : index
    %c0_36 = arith.constant 0 : index
    %86 = vector.load %arg5[%c0_33, %c1_34, %c0_35, %c0_36] : memref<1x4x8x256xf32, #tpu.memory_space<vmem>>, vector<1x1x8x256xf32>
    %87 = vector.shape_cast %86 : vector<1x1x8x256xf32> to vector<8x256xf32>
    %88 = vector.shape_cast %85 : vector<8x256xf32> to vector<1x1x8x256xf32>
    tpu.vector_store %arg5[%c0_33, %c1_34, %c0_35, %c0_36], %88 {strides = array<i32>} : memref<1x4x8x256xf32, #tpu.memory_space<vmem>>, vector<1x1x8x256xf32>,
    %89 = arith.mulf %71, %61 : vector<32x256xf32>
    %90 = vector.shape_cast %89 : vector<32x256xf32> to vector<4x8x256xf32>
    %cst_37 = arith.constant dense<0.000000e+00> : vector<8x256xf32>
    %91 = vector.multi_reduction <add>, %90, %cst_37 [0] : vector<4x8x256xf32> to vector<8x256xf32>
    %c0_38 = arith.constant 0 : index
    %c2 = arith.constant 2 : index
    %c0_39 = arith.constant 0 : index
    %c0_40 = arith.constant 0 : index
    %92 = vector.load %arg5[%c0_38, %c2, %c0_39, %c0_40] : memref<1x4x8x256xf32, #tpu.memory_space<vmem>>, vector<1x1x8x256xf32>
    %93 = vector.shape_cast %92 : vector<1x1x8x256xf32> to vector<8x256xf32>
    %94 = arith.addf %93, %91 : vector<8x256xf32>
    %c0_41 = arith.constant 0 : index
    %c2_42 = arith.constant 2 : index
    %c0_43 = arith.constant 0 : index
    %c0_44 = arith.constant 0 : index
    %95 = vector.load %arg5[%c0_41, %c2_42, %c0_43, %c0_44] : memref<1x4x8x256xf32, #tpu.memory_space<vmem>>, vector<1x1x8x256xf32>
    %96 = vector.shape_cast %95 : vector<1x1x8x256xf32> to vector<8x256xf32>
    %97 = vector.shape_cast %94 : vector<8x256xf32> to vector<1x1x8x256xf32>
    tpu.vector_store %arg5[%c0_41, %c2_42, %c0_43, %c0_44], %97 {strides = array<i32>} : memref<1x4x8x256xf32, #tpu.memory_space<vmem>>, vector<1x1x8x256xf32>,
    %98 = vector.shape_cast %71 : vector<32x256xf32> to vector<4x8x256xf32>
    %cst_45 = arith.constant dense<0.000000e+00> : vector<8x256xf32>
    %99 = vector.multi_reduction <add>, %98, %cst_45 [0] : vector<4x8x256xf32> to vector<8x256xf32>
    %c0_46 = arith.constant 0 : index
    %c3 = arith.constant 3 : index
    %c0_47 = arith.constant 0 : index
    %c0_48 = arith.constant 0 : index
    %100 = vector.load %arg5[%c0_46, %c3, %c0_47, %c0_48] : memref<1x4x8x256xf32, #tpu.memory_space<vmem>>, vector<1x1x8x256xf32>
    %101 = vector.shape_cast %100 : vector<1x1x8x256xf32> to vector<8x256xf32>
    %102 = arith.addf %101, %99 : vector<8x256xf32>
    %c0_49 = arith.constant 0 : index
    %c3_50 = arith.constant 3 : index
    %c0_51 = arith.constant 0 : index
    %c0_52 = arith.constant 0 : index
    %103 = vector.load %arg5[%c0_49, %c3_50, %c0_51, %c0_52] : memref<1x4x8x256xf32, #tpu.memory_space<vmem>>, vector<1x1x8x256xf32>
    %104 = vector.shape_cast %103 : vector<1x1x8x256xf32> to vector<8x256xf32>
    %105 = vector.shape_cast %102 : vector<8x256xf32> to vector<1x1x8x256xf32>
    tpu.vector_store %arg5[%c0_49, %c3_50, %c0_51, %c0_52], %105 {strides = array<i32>} : memref<1x4x8x256xf32, #tpu.memory_space<vmem>>, vector<1x1x8x256xf32>,
    return
  }
  func.func @transform_0(%arg0: i32, %arg1: i32) -> (i32, i32) {
    %c1_i32 = arith.constant 1 : i32
    %0 = arith.muli %arg0, %c1_i32 : i32
    %1 = arith.addi %0, %arg1 : i32
    %c0_i32 = arith.constant 0 : i32
    %c0_i32_0 = arith.constant 0 : i32
    return %1, %c0_i32 : i32, i32
  }
  func.func @transform_1(%arg0: i32, %arg1: i32) -> (i32, i32) {
    %c1_i32 = arith.constant 1 : i32
    %0 = arith.muli %arg0, %c1_i32 : i32
    %1 = arith.addi %0, %arg1 : i32
    %c0_i32 = arith.constant 0 : i32
    %c0_i32_0 = arith.constant 0 : i32
    return %1, %c0_i32 : i32, i32
  }
  func.func @transform_2(%arg0: i32, %arg1: i32) -> (i32, i32) {
    %c1_i32 = arith.constant 1 : i32
    %0 = arith.muli %arg0, %c1_i32 : i32
    %1 = arith.addi %0, %arg1 : i32
    %c0_i32 = arith.constant 0 : i32
    %c0_i32_0 = arith.constant 0 : i32
    return %1, %c0_i32 : i32, i32
  }
  func.func @transform_3(%arg0: i32, %arg1: i32) -> (i32, i32, i32, i32) {
    %c0_i32 = arith.constant 0 : i32
    %c0_i32_0 = arith.constant 0 : i32
    %c0_i32_1 = arith.constant 0 : i32
    %c0_i32_2 = arith.constant 0 : i32
    return %arg0, %c0_i32, %c0_i32_0, %c0_i32_1 : i32, i32, i32, i32
  }
}

</mosaic_0001>

<llo_original>
// kernel: tpu_custom_call.1
$region0: #{tpu_custom_call.1}
  #allocation0 [shape = 'u32[]', space=smem, size = 0x4, offset = 0x4, fixed_abs, tag = 'smem constant byte address 0x4 - core index']
  #allocation1 [shape = 'u32[144,128]{1,0:T(1,128)}', space=vmem, size = 0x12000, scoped, tag = 'internal scratch']
  %s0 = inlined_call_operand.hbm [shape: f32[64,256], index: 0, kind: input, shape index: {}]
  %s1 = inlined_call_operand.vmem [shape: f32[64,3], index: 1, kind: input, shape index: {}]
  %s2 = inlined_call_operand.hbm [shape: s8[64,768], index: 2, kind: input, shape index: {}]
  %s3 = inlined_call_operand.hbm [shape: f32[2,4,8,256], index: 3, kind: output, shape index: {}]
  %s4 = sld [smem:[#allocation0]]
  $region57: #{tpu_custom_call.1} parent=0
    _
  %s6 = ssub.s32 1, %s4
  %s7 = scalar_select 0, %s6, %s4
  $region1: #{tpu_custom_call.1} parent=0
    #allocation2 [shape = 'u8[65536]{0}', space=vmem, size = 0x10000, scoped, tag = 'input window, operand 0']
    #allocation3 [shape = 's32[2]{0}', space=sflag, size = 0x8, scoped, tag = 'scoped memory for tpu_custom_call.1']
    #allocation4 [shape = 's32[2]{0}', space=sflag, size = 0x8, scoped, tag = 'scoped memory for tpu_custom_call.1']
    #allocation5 [shape = 'u8[49152]{0}', space=vmem, size = 0xc000, scoped, tag = 'input window, operand 2']
    #allocation6 [shape = 's32[2]{0}', space=sflag, size = 0x8, scoped, tag = 'scoped memory for tpu_custom_call.1']
    #allocation7 [shape = 'u8[65536]{0}', space=vmem, size = 0x10000, scoped, tag = 'output window, operand 0']
    %8 = vsyncpa [#allocation3], 0
    %s9 = scalar_lea.sflag [#allocation3], 1
    %10 = vsyncpa %s9, 0
    %11 = vsyncpa [#allocation6], 0
    %s12 = scalar_lea.sflag [#allocation6], 1
    %13 = vsyncpa %s12, 0
    %14 = vsyncpa [#allocation4], 0
    %s15 = scalar_lea.sflag [#allocation4], 1
    %16 = vsyncpa %s15, 0
    loop: start=0, step=1, limit=4
    $region2: #{tpu_custom_call.1} parent=1 // loop_pre_header
      _
    $region3: #{tpu_custom_call.1} parent=1 // loop_header
      %s18 = sphi 0, %s22
      %p19 = scmp.ge.s32.totalorder %s18, 4
      %s25 = sphi 0, %s37
      %s26 = sphi 0, %s33
      %s27 = sphi 0, %s25
      %s28 = sphi 0, %s26
      %s29 = sphi 0, %s27
      %s30 = sphi 0, %s28
      %s42 = sphi 0, %s44
      %s45 = sphi 0, %s42
      %s46 = sphi 0, %s45
      %s62 = sphi 0, %s46
      %s70 = sphi 0, %s72
      %s73 = sphi 0, %s70
      %s74 = sphi 0, %s73
      %s90 = sphi 0, %s74
      %s98 = sphi 0, %s100
      %s101 = sphi 0, %s98
      %s102 = sphi 0, %s101
      %s118 = sphi 0, %s102
      %s124 = sphi 0, %s126
      %s127 = sphi 0, %s124
      %s128 = sphi 0, %s127
      %s144 = sphi 0, %s128
    $region4: #{tpu_custom_call.1} parent=1 // loop_header_branch
      %21 = sbr.rel (%p19) target = $region8
    $region5: #{tpu_custom_call.1} parent=1 // loop_body
      %s23 = ssub.s32 %s18, 1
      %s24 = ssub.s32 %s18, 2
      %s31 = sadd.s32 1, %s26
      %p32 = scmp.ge.s32.totalorder %s31, 1
      %s33 = scalar_select %p32, 0, %s31
      %s34 = sadd.s32 1, %s25
      %s35 = scalar_select %p32, %s34, %s25
      %p36 = scmp.ge.s32.totalorder %s35, 2
      %s37 = scalar_select %p36, 0, %s35
      %s38 = sadd.s32 %s25, %s26
      %s39 = sadd.s32 %s37, %s33
      %s40 = ssub.s32 %s38, %s39
      %p41 = scmp.eq.s32.totalorder %s40, 0
      %s43 = sadd.s32 %s42, 1
      %s44 = scalar_select %p41, %s42, %s43
      %p47 = pneg %p41
      %p48 = scmp.eq.s32.totalorder %s18, 1
      %p49 = por %p47, %p48
      %p50 = scmp.ne.s32.totalorder %s42, %s45
      %p51 = scmp.eq.s32.totalorder %s18, 0
      %p52 = por %p50, %p51
      %p53 = scmp.ne.s32.totalorder %s42, %s45
      %p54 = scmp.eq.s32.totalorder %s23, 1
      %p55 = por %p53, %p54
      %p56 = scmp.ne.s32.totalorder %s45, %s46
      %p57 = scmp.eq.s32.totalorder %s23, 0
      %p58 = por %p56, %p57
      %p59 = scmp.ne.s32.totalorder %s45, %s46
      %p60 = scmp.eq.s32.totalorder %s24, 1
      %p61 = por %p59, %p60
      %p63 = scmp.ne.s32.totalorder %s46, %s62
      %p64 = scmp.eq.s32.totalorder %s24, 0
      %p65 = por %p63, %p64
      %s66 = sadd.s32 %s25, %s26
      %s67 = sadd.s32 %s37, %s33
      %s68 = ssub.s32 %s66, %s67
      %p69 = scmp.eq.s32.totalorder %s68, 0
      %s71 = sadd.s32 %s70, 1
      %s72 = scalar_select %p69, %s70, %s71
      %p75 = pneg %p69
      %p76 = scmp.eq.s32.totalorder %s18, 1
      %p77 = por %p75, %p76
      %p78 = scmp.ne.s32.totalorder %s70, %s73
      %p79 = scmp.eq.s32.totalorder %s18, 0
      %p80 = por %p78, %p79
      %p81 = scmp.ne.s32.totalorder %s70, %s73
      %p82 = scmp.eq.s32.totalorder %s23, 1
      %p83 = por %p81, %p82
      %p84 = scmp.ne.s32.totalorder %s73, %s74
      %p85 = scmp.eq.s32.totalorder %s23, 0
      %p86 = por %p84, %p85
      %p87 = scmp.ne.s32.totalorder %s73, %s74
      %p88 = scmp.eq.s32.totalorder %s24, 1
      %p89 = por %p87, %p88
      %p91 = scmp.ne.s32.totalorder %s74, %s90
      %p92 = scmp.eq.s32.totalorder %s24, 0
      %p93 = por %p91, %p92
      %s94 = sadd.s32 %s25, %s26
      %s95 = sadd.s32 %s37, %s33
      %s96 = ssub.s32 %s94, %s95
      %p97 = scmp.eq.s32.totalorder %s96, 0
      %s99 = sadd.s32 %s98, 1
      %s100 = scalar_select %p97, %s98, %s99
      %p103 = pneg %p97
      %p104 = scmp.eq.s32.totalorder %s18, 1
      %p105 = por %p103, %p104
      %p106 = scmp.ne.s32.totalorder %s98, %s101
      %p107 = scmp.eq.s32.totalorder %s18, 0
      %p108 = por %p106, %p107
      %p109 = scmp.ne.s32.totalorder %s98, %s101
      %p110 = scmp.eq.s32.totalorder %s23, 1
      %p111 = por %p109, %p110
      %p112 = scmp.ne.s32.totalorder %s101, %s102
      %p113 = scmp.eq.s32.totalorder %s23, 0
      %p114 = por %p112, %p113
      %p115 = scmp.ne.s32.totalorder %s101, %s102
      %p116 = scmp.eq.s32.totalorder %s24, 1
      %p117 = por %p115, %p116
      %p119 = scmp.ne.s32.totalorder %s102, %s118
      %p120 = scmp.eq.s32.totalorder %s24, 0
      %p121 = por %p119, %p120
      %s122 = ssub.s32 %s25, %s37
      %p123 = scmp.eq.s32.totalorder %s122, 0
      %s125 = sadd.s32 %s124, 1
      %s126 = scalar_select %p123, %s124, %s125
      %p129 = pneg %p123
      %p130 = scmp.eq.s32.totalorder %s18, 1
      %p131 = por %p129, %p130
      %p132 = scmp.ne.s32.totalorder %s124, %s127
      %p133 = scmp.eq.s32.totalorder %s18, 0
      %p134 = por %p132, %p133
      %p135 = scmp.ne.s32.totalorder %s124, %s127
      %p136 = scmp.eq.s32.totalorder %s23, 1
      %p137 = por %p135, %p136
      %p138 = scmp.ne.s32.totalorder %s127, %s128
      %p139 = scmp.eq.s32.totalorder %s23, 0
      %p140 = por %p138, %p139
      %p141 = scmp.ne.s32.totalorder %s127, %s128
      %p142 = scmp.eq.s32.totalorder %s24, 1
      %p143 = por %p141, %p142
      %p145 = scmp.ne.s32.totalorder %s128, %s144
      %p146 = scmp.eq.s32.totalorder %s24, 0
      %p147 = por %p145, %p146
      %p148 = scmp.le.s32.totalorder 1, %s18
      %p149 = scmp.lt.s32.totalorder %s18, 3
      %p150 = pnand %p148, %p149
      %p151 = pneg %p150
      // Predicated region
      $region9: #{tpu_custom_call.1} parent=5 // pred_check
        _
      $region10: #{tpu_custom_call.1} parent=5 // pred_check_branch
        %153 = sbr.rel (%p150) target = $region12
      $region11: #{tpu_custom_call.1} parent=5 // pred_region
        %s154 = ssub.s32 %s18, 1
      $region12: #{tpu_custom_call.1} parent=5 // pred_fallthru
        _
      %p155 = scmp.lt.s32.totalorder %s18, 2
      // Predicated region
      $region13: #{tpu_custom_call.1} parent=5 // pred_check
        %p156 = pneg %p155
      $region14: #{tpu_custom_call.1} parent=5 // pred_check_branch
        %158 = sbr.rel (%p156) target = $region16
      $region15: #{tpu_custom_call.1} parent=5 // pred_region
        // Predicated region
        $region17: #{tpu_custom_call.1} parent=15 // pred_check
          %p159 = pneg %p52
        $region18: #{tpu_custom_call.1} parent=15 // pred_check_branch
          %161 = sbr.rel (%p159) target = $region20
        $region19: #{tpu_custom_call.1} parent=15 // pred_region
          %s162 = sand.u32 %s42, 1
          %s163 = scalar_lea.sflag [#allocation3], %s162
          %s164 = sand.u32 %s42, 1
          %s165 = smul.addr %s164, 64
          %s166 = scalar_lea.vmem [#allocation2], %s165
          %s167 = sadd.s32 %s25, %s26
          %s168 = smul.u32 4, %s167
          %s170 = ssub.s32 1024, 1024
          %171 = vsyncadd %s163, %s170
          %s172 = smul.addr %s168, 2
          %s173 = smul.addr %s172, 128
          %s174 = scalar_lea.hbm %s0, %s173
          %s175 = sshll.u32 %s166, 4
          %s176 = int_to_ptr.vmem [resolvable:$true] %s175
          %181 = dma.hbm_to_vmem [thread:$0]  %s174, 1024, %s176, %s163, 256, 256, 16
        $region20: #{tpu_custom_call.1} parent=15 // pred_fallthru
          _
        // Predicated region
        $region21: #{tpu_custom_call.1} parent=15 // pred_check
          %p182 = pneg %p80
        $region22: #{tpu_custom_call.1} parent=15 // pred_check_branch
          %184 = sbr.rel (%p182) target = $region24
        $region23: #{tpu_custom_call.1} parent=15 // pred_region
          %s185 = sadd.s32 %s25, %s26
          %s186 = smul.u32 4, %s185
          %p187 = scmp.lt.s32.totalorder %s186, 7
          %s188 = scalar_select %p187, %s186, 7
          %s189 = smul.addr %s188, 8
          %s190 = scalar_lea.vmem %s1, %s189
          %s191 = sadd.s32 %s25, %s26
          %s192 = smul.u32 4, %s191
        $region24: #{tpu_custom_call.1} parent=15 // pred_fallthru
          _
        // Predicated region
        $region25: #{tpu_custom_call.1} parent=15 // pred_check
          %p193 = pneg %p108
        $region26: #{tpu_custom_call.1} parent=15 // pred_check_branch
          %195 = sbr.rel (%p193) target = $region28
        $region27: #{tpu_custom_call.1} parent=15 // pred_region
          %s196 = sand.u32 %s98, 1
          %s197 = scalar_lea.sflag [#allocation6], %s196
          %s198 = sand.u32 %s98, 1
          %s199 = smul.addr %s198, 48
          %s200 = scalar_lea.vmem [#allocation5], %s199
          %s201 = sadd.s32 %s25, %s26
          %s203 = ssub.s32 768, 768
          %204 = vsyncadd %s197, %s203
          %s205 = smul.addr %s201, 6
          %s206 = smul.addr %s205, 128
          %s207 = scalar_lea.hbm %s2, %s206
          %s209 = sshll.u32 %s200, 4
          %s210 = int_to_ptr.vmem [resolvable:$true] %s209
          %212 = dma.hbm_to_vmem [thread:$0]  %s207, 768, %s210, %s197
        $region28: #{tpu_custom_call.1} parent=15 // pred_fallthru
          _
      $region16: #{tpu_custom_call.1} parent=5 // pred_fallthru
        _
      %p213 = scmp.le.s32.totalorder 1, %s18
      %p214 = scmp.lt.s32.totalorder %s18, 3
      %p215 = pnand %p213, %p214
      %p216 = pneg %p215
      // Predicated region
      $region29: #{tpu_custom_call.1} parent=5 // pred_check
        _
      $region30: #{tpu_custom_call.1} parent=5 // pred_check_branch
        %218 = sbr.rel (%p215) target = $region32
      $region31: #{tpu_custom_call.1} parent=5 // pred_region
        %s219 = ssub.s32 %s18, 1
        %s220 = sand.u32 %s45, 1
        %s221 = scalar_lea.sflag [#allocation3], %s220
        %s222 = sand.u32 %s45, 1
        %s223 = smul.addr %s222, 64
        %s224 = scalar_lea.vmem [#allocation2], %s223
        // Predicated region
        $region33: #{tpu_custom_call.1} parent=31 // pred_check
          %p225 = pneg %p58
        $region34: #{tpu_custom_call.1} parent=31 // pred_check_branch
          %227 = sbr.rel (%p225) target = $region36
        $region35: #{tpu_custom_call.1} parent=31 // pred_region
          %228 = dma.done %s221, 1024
        $region36: #{tpu_custom_call.1} parent=31 // pred_fallthru
          _
        %s229 = sand.u32 %s101, 1
        %s230 = scalar_lea.sflag [#allocation6], %s229
        %s231 = sand.u32 %s101, 1
        %s232 = smul.addr %s231, 48
        %s233 = scalar_lea.vmem [#allocation5], %s232
        // Predicated region
        $region37: #{tpu_custom_call.1} parent=31 // pred_check
          %p234 = pneg %p114
        $region38: #{tpu_custom_call.1} parent=31 // pred_check_branch
          %236 = sbr.rel (%p234) target = $region40
        $region39: #{tpu_custom_call.1} parent=31 // pred_region
          %237 = dma.done %s230, 768
        $region40: #{tpu_custom_call.1} parent=31 // pred_fallthru
          _
        %s238 = sand.u32 %s45, 1
        %s239 = scalar_lea.sflag [#allocation3], %s238
        %s240 = sand.u32 %s45, 1
        %s241 = smul.addr %s240, 64
        %s242 = scalar_lea.vmem [#allocation2], %s241
        %p243 = pneg %p58
        %p244 = pneg %p55
        %s245 = sadd.s32 %s27, %s28
        %s246 = smul.u32 4, %s245
        %p247 = scmp.lt.s32.totalorder %s246, 7
        %s248 = scalar_select %p247, %s246, 7
        %s249 = smul.addr %s248, 8
        %s250 = scalar_lea.vmem %s1, %s249
        %p251 = pneg %p86
        %p252 = pneg %p83
        %s253 = sand.u32 %s101, 1
        %s254 = scalar_lea.sflag [#allocation6], %s253
        %s255 = sand.u32 %s101, 1
        %s256 = smul.addr %s255, 48
        %s257 = scalar_lea.vmem [#allocation5], %s256
        %p258 = pneg %p114
        %p259 = pneg %p111
        %p260 = pneg %p140
        %p261 = pneg %p137
        %s262 = sand.u32 %s127, 1
        %s263 = scalar_lea.sflag [#allocation4], %s262
        %s264 = sand.u32 %s127, 1
        %s265 = smul.addr %s264, 64
        %s266 = scalar_lea.vmem [#allocation7], %s265
        %s267 = sadd.s32 %s27, %s28
        %s268 = smul.u32 4, %s267
        %s269 = sadd.s32 %s27, %s28
        %s270 = smul.u32 4, %s269
        %p271 = scmp.lt.s32.totalorder %s270, 7
        %s272 = scalar_select %p271, %s270, 7
        %s273 = smul.addr %s272, 8
        %s274 = scalar_lea.vmem %s1, %s273
        %s275 = sadd.s32 %s27, %s28
        %s276 = smul.u32 4, %s275
        %s277 = sadd.s32 %s27, %s28
        %p278 = scmp.eq.s32.totalorder %s28, 0
        // Predicated region
        $region41: #{tpu_custom_call.1} parent=31 // pred_check
          %p279 = pneg %p278
        $region42: #{tpu_custom_call.1} parent=31 // pred_check_branch
          %281 = sbr.rel (%p279) target = $region44
        $region43: #{tpu_custom_call.1} parent=31 // pred_region
          %282 = vst [vmem:[%s266] sm:$0xff] 0.0
          %283 = vst [vmem:[%s266 + $0x8] sm:$0xff] 0.0
          %284 = vst [vmem:[%s266 + $0x10] sm:$0xff] 0.0
          %285 = vst [vmem:[%s266 + $0x18] sm:$0xff] 0.0
          %286 = vst [vmem:[%s266 + $0x20] sm:$0xff] 0.0
          %287 = vst [vmem:[%s266 + $0x28] sm:$0xff] 0.0
          %288 = vst [vmem:[%s266 + $0x30] sm:$0xff] 0.0
          %289 = vst [vmem:[%s266 + $0x38] sm:$0xff] 0.0
        $region44: #{tpu_custom_call.1} parent=31 // pred_fallthru
          _
        %v290 = vld [vmem:[%s224] sm:$0xff]
        %v291 = vld [vmem:[%s224 + $0x8] sm:$0xff]
        %v292 = vld [vmem:[%s224 + $0x10] sm:$0xff]
        %v293 = vld [vmem:[%s224 + $0x18] sm:$0xff]
        %v294 = vld [vmem:[%s224 + $0x20] sm:$0xff]
        %v295 = vld [vmem:[%s224 + $0x28] sm:$0xff]
        %v296 = vld [vmem:[%s224 + $0x30] sm:$0xff]
        %v297 = vld [vmem:[%s224 + $0x38] sm:$0xff]
        %v298 = vld [vmem:[%s274] sm:$0xff]
        %v299 = vld [vmem:[%s274 + $0x8] sm:$0xff]
        %v300 = vld [vmem:[%s274 + $0x10] sm:$0xff]
        %v301 = vld [vmem:[%s274 + $0x18] sm:$0xff]
        %v302 = vld [vmem:[%s233] sm:$0xff]
        %v303 = vld [vmem:[%s233 + $0x8] sm:$0xff]
        %v304 = vunpack.c.0.s8 %v302
        %v305 = vunpack.c.0.s8 %v303
        %v306 = vunpack.c.1.s8 %v302
        %v307 = vunpack.c.1.s8 %v303
        %v308 = vunpack.c.2.s8 %v302
        %v309 = vunpack.c.2.s8 %v303
        %v310 = vunpack.c.3.s8 %v302
        %v311 = vunpack.c.3.s8 %v303
        %v312 = vcvt.s32.f32 %v304
        %v313 = vcvt.s32.f32 %v305
        %v314 = vcvt.s32.f32 %v306
        %v315 = vcvt.s32.f32 %v307
        %v316 = vcvt.s32.f32 %v308
        %v317 = vcvt.s32.f32 %v309
        %v318 = vcvt.s32.f32 %v310
        %v319 = vcvt.s32.f32 %v311
        %321 = vset.pattern.permute.xlu0 0
        %322 = vperm.xlu0 %321, %v298
        %v323 = vpop.permute.xlu0 %322
        %326 = vset.pattern.permute.xlu0 0
        %327 = vperm.xlu0 %326, %v299
        %v328 = vpop.permute.xlu0 %327
        %331 = vset.pattern.permute.xlu0 0
        %332 = vperm.xlu0 %331, %v300
        %v333 = vpop.permute.xlu0 %332
        %336 = vset.pattern.permute.xlu0 0
        %337 = vperm.xlu0 %336, %v301
        %v338 = vpop.permute.xlu0 %337
        %v340 = vmul.f32 %v312, %v323
        %v341 = vmul.f32 %v313, %v323
        %v342 = vmul.f32 %v314, %v328
        %v343 = vmul.f32 %v315, %v328
        %v344 = vmul.f32 %v316, %v333
        %v345 = vmul.f32 %v317, %v333
        %v346 = vmul.f32 %v318, %v338
        %v347 = vmul.f32 %v319, %v338
        %v348 = vmax.f32 %v340, 0.0
        %v349 = vmax.f32 %v341, 0.0
        %v350 = vmax.f32 %v342, 0.0
        %v351 = vmax.f32 %v343, 0.0
        %v352 = vmax.f32 %v344, 0.0
        %v353 = vmax.f32 %v345, 0.0
        %v354 = vmax.f32 %v346, 0.0
        %v355 = vmax.f32 %v347, 0.0
        %v356 = vsub.f32 1.0, %v298
        %v357 = vsub.f32 1.0, %v299
        %v358 = vsub.f32 1.0, %v300
        %v359 = vsub.f32 1.0, %v301
        %361 = vset.pattern.permute.xlu0 0
        %362 = vperm.xlu0 %361, %v356
        %v363 = vpop.permute.xlu0 %362
        %366 = vset.pattern.permute.xlu0 0
        %367 = vperm.xlu0 %366, %v357
        %v368 = vpop.permute.xlu0 %367
        %371 = vset.pattern.permute.xlu0 0
        %372 = vperm.xlu0 %371, %v358
        %v373 = vpop.permute.xlu0 %372
        %376 = vset.pattern.permute.xlu0 0
        %377 = vperm.xlu0 %376, %v359
        %v378 = vpop.permute.xlu0 %377
        %v380 = vmul.f32 %v312, %v363
        %v381 = vmul.f32 %v313, %v363
        %v382 = vmul.f32 %v314, %v368
        %v383 = vmul.f32 %v315, %v368
        %v384 = vmul.f32 %v316, %v373
        %v385 = vmul.f32 %v317, %v373
        %v386 = vmul.f32 %v318, %v378
        %v387 = vmul.f32 %v319, %v378
        %v388 = vmax.f32 %v380, 0.0
        %v389 = vmax.f32 %v381, 0.0
        %v390 = vmax.f32 %v382, 0.0
        %v391 = vmax.f32 %v383, 0.0
        %v392 = vmax.f32 %v384, 0.0
        %v393 = vmax.f32 %v385, 0.0
        %v394 = vmax.f32 %v386, 0.0
        %v395 = vmax.f32 %v387, 0.0
        %v396 = vmax.f32 %v298, 0.0
        %v397 = vmax.f32 %v299, 0.0
        %v398 = vmax.f32 %v300, 0.0
        %v399 = vmax.f32 %v301, 0.0
        %v400 = vmax.f32 %v356, 0.0
        %v401 = vmax.f32 %v357, 0.0
        %v402 = vmax.f32 %v358, 0.0
        %v403 = vmax.f32 %v359, 0.0
        %v404 = vld [vmem:[%s233 + $0x10] sm:$0xff]
        %v405 = vld [vmem:[%s233 + $0x18] sm:$0xff]
        %v406 = vunpack.c.0.s8 %v404
        %v407 = vunpack.c.0.s8 %v405
        %v408 = vunpack.c.1.s8 %v404
        %v409 = vunpack.c.1.s8 %v405
        %v410 = vunpack.c.2.s8 %v404
        %v411 = vunpack.c.2.s8 %v405
        %v412 = vunpack.c.3.s8 %v404
        %v413 = vunpack.c.3.s8 %v405
        %v414 = vcvt.s32.f32 %v406
        %v415 = vcvt.s32.f32 %v407
        %v416 = vcvt.s32.f32 %v408
        %v417 = vcvt.s32.f32 %v409
        %v418 = vcvt.s32.f32 %v410
        %v419 = vcvt.s32.f32 %v411
        %v420 = vcvt.s32.f32 %v412
        %v421 = vcvt.s32.f32 %v413
        %422 = vset.pattern.permute.xlu0 1
        %423 = vperm.xlu0 %422, %v298
        %v424 = vpop.permute.xlu0 %423
        %426 = vset.pattern.permute.xlu0 1
        %427 = vperm.xlu0 %426, %v299
        %v428 = vpop.permute.xlu0 %427
        %430 = vset.pattern.permute.xlu0 1
        %431 = vperm.xlu0 %430, %v300
        %v432 = vpop.permute.xlu0 %431
        %434 = vset.pattern.permute.xlu0 1
        %435 = vperm.xlu0 %434, %v301
        %v436 = vpop.permute.xlu0 %435
        %v438 = vmul.f32 %v414, %v424
        %v439 = vmul.f32 %v415, %v424
        %v440 = vmul.f32 %v416, %v428
        %v441 = vmul.f32 %v417, %v428
        %v442 = vmul.f32 %v418, %v432
        %v443 = vmul.f32 %v419, %v432
        %v444 = vmul.f32 %v420, %v436
        %v445 = vmul.f32 %v421, %v436
        %v446 = vmax.f32 %v348, %v438
        %v447 = vmax.f32 %v349, %v439
        %v448 = vmax.f32 %v350, %v440
        %v449 = vmax.f32 %v351, %v441
        %v450 = vmax.f32 %v352, %v442
        %v451 = vmax.f32 %v353, %v443
        %v452 = vmax.f32 %v354, %v444
        %v453 = vmax.f32 %v355, %v445
        %454 = vset.pattern.permute.xlu0 1
        %455 = vperm.xlu0 %454, %v356
        %v456 = vpop.permute.xlu0 %455
        %458 = vset.pattern.permute.xlu0 1
        %459 = vperm.xlu0 %458, %v357
        %v460 = vpop.permute.xlu0 %459
        %462 = vset.pattern.permute.xlu0 1
        %463 = vperm.xlu0 %462, %v358
        %v464 = vpop.permute.xlu0 %463
        %466 = vset.pattern.permute.xlu0 1
        %467 = vperm.xlu0 %466, %v359
        %v468 = vpop.permute.xlu0 %467
        %v470 = vmul.f32 %v414, %v456
        %v471 = vmul.f32 %v415, %v456
        %v472 = vmul.f32 %v416, %v460
        %v473 = vmul.f32 %v417, %v460
        %v474 = vmul.f32 %v418, %v464
        %v475 = vmul.f32 %v419, %v464
        %v476 = vmul.f32 %v420, %v468
        %v477 = vmul.f32 %v421, %v468
        %v478 = vmax.f32 %v388, %v470
        %v479 = vmax.f32 %v389, %v471
        %v480 = vmax.f32 %v390, %v472
        %v481 = vmax.f32 %v391, %v473
        %v482 = vmax.f32 %v392, %v474
        %v483 = vmax.f32 %v393, %v475
        %v484 = vmax.f32 %v394, %v476
        %v485 = vmax.f32 %v395, %v477
        %486 = vrot.lane.b32.xlu0 %v298, 127
        %v487 = vpop.permute.xlu0 %486
        %488 = vrot.lane.b32.xlu0 %v299, 127
        %v489 = vpop.permute.xlu0 %488
        %490 = vrot.lane.b32.xlu0 %v300, 127
        %v491 = vpop.permute.xlu0 %490
        %492 = vrot.lane.b32.xlu0 %v301, 127
        %v493 = vpop.permute.xlu0 %492
        %v498 = vmax.f32 %v396, %v487
        %v499 = vmax.f32 %v397, %v489
        %v500 = vmax.f32 %v398, %v491
        %v501 = vmax.f32 %v399, %v493
        %502 = vrot.lane.b32.xlu0 %v356, 127
        %v503 = vpop.permute.xlu0 %502
        %504 = vrot.lane.b32.xlu0 %v357, 127
        %v505 = vpop.permute.xlu0 %504
        %506 = vrot.lane.b32.xlu0 %v358, 127
        %v507 = vpop.permute.xlu0 %506
        %508 = vrot.lane.b32.xlu0 %v359, 127
        %v509 = vpop.permute.xlu0 %508
        %v514 = vmax.f32 %v400, %v503
        %v515 = vmax.f32 %v401, %v505
        %v516 = vmax.f32 %v402, %v507
        %v517 = vmax.f32 %v403, %v509
        %v518 = vld [vmem:[%s233 + $0x20] sm:$0xff]
        %v519 = vld [vmem:[%s233 + $0x28] sm:$0xff]
        %v520 = vunpack.c.0.s8 %v518
        %v521 = vunpack.c.0.s8 %v519
        %v522 = vunpack.c.1.s8 %v518
        %v523 = vunpack.c.1.s8 %v519
        %v524 = vunpack.c.2.s8 %v518
        %v525 = vunpack.c.2.s8 %v519
        %v526 = vunpack.c.3.s8 %v518
        %v527 = vunpack.c.3.s8 %v519
        %v528 = vcvt.s32.f32 %v520
        %v529 = vcvt.s32.f32 %v521
        %v530 = vcvt.s32.f32 %v522
        %v531 = vcvt.s32.f32 %v523
        %v532 = vcvt.s32.f32 %v524
        %v533 = vcvt.s32.f32 %v525
        %v534 = vcvt.s32.f32 %v526
        %v535 = vcvt.s32.f32 %v527
        %536 = vset.pattern.permute.xlu0 2
        %537 = vperm.xlu0 %536, %v298
        %v538 = vpop.permute.xlu0 %537
        %540 = vset.pattern.permute.xlu0 2
        %541 = vperm.xlu0 %540, %v299
        %v542 = vpop.permute.xlu0 %541
        %544 = vset.pattern.permute.xlu0 2
        %545 = vperm.xlu0 %544, %v300
        %v546 = vpop.permute.xlu0 %545
        %548 = vset.pattern.permute.xlu0 2
        %549 = vperm.xlu0 %548, %v301
        %v550 = vpop.permute.xlu0 %549
        %v552 = vmul.f32 %v528, %v538
        %v553 = vmul.f32 %v529, %v538
        %v554 = vmul.f32 %v530, %v542
        %v555 = vmul.f32 %v531, %v542
        %v556 = vmul.f32 %v532, %v546
        %v557 = vmul.f32 %v533, %v546
        %v558 = vmul.f32 %v534, %v550
        %v559 = vmul.f32 %v535, %v550
        %v560 = vmax.f32 %v446, %v552
        %v561 = vmax.f32 %v447, %v553
        %v562 = vmax.f32 %v448, %v554
        %v563 = vmax.f32 %v449, %v555
        %v564 = vmax.f32 %v450, %v556
        %v565 = vmax.f32 %v451, %v557
        %v566 = vmax.f32 %v452, %v558
        %v567 = vmax.f32 %v453, %v559
        %568 = vset.pattern.permute.xlu0 2
        %569 = vperm.xlu0 %568, %v356
        %v570 = vpop.permute.xlu0 %569
        %572 = vset.pattern.permute.xlu0 2
        %573 = vperm.xlu0 %572, %v357
        %v574 = vpop.permute.xlu0 %573
        %576 = vset.pattern.permute.xlu0 2
        %577 = vperm.xlu0 %576, %v358
        %v578 = vpop.permute.xlu0 %577
        %580 = vset.pattern.permute.xlu0 2
        %581 = vperm.xlu0 %580, %v359
        %v582 = vpop.permute.xlu0 %581
        %v584 = vmul.f32 %v528, %v570
        %v585 = vmul.f32 %v529, %v570
        %v586 = vmul.f32 %v530, %v574
        %v587 = vmul.f32 %v531, %v574
        %v588 = vmul.f32 %v532, %v578
        %v589 = vmul.f32 %v533, %v578
        %v590 = vmul.f32 %v534, %v582
        %v591 = vmul.f32 %v535, %v582
        %v592 = vmax.f32 %v478, %v584
        %v593 = vmax.f32 %v479, %v585
        %v594 = vmax.f32 %v480, %v586
        %v595 = vmax.f32 %v481, %v587
        %v596 = vmax.f32 %v482, %v588
        %v597 = vmax.f32 %v483, %v589
        %v598 = vmax.f32 %v484, %v590
        %v599 = vmax.f32 %v485, %v591
        %600 = vrot.lane.b32.xlu0 %v298, 126
        %v601 = vpop.permute.xlu0 %600
        %602 = vrot.lane.b32.xlu0 %v299, 126
        %v603 = vpop.permute.xlu0 %602
        %604 = vrot.lane.b32.xlu0 %v300, 126
        %v605 = vpop.permute.xlu0 %604
        %606 = vrot.lane.b32.xlu0 %v301, 126
        %v607 = vpop.permute.xlu0 %606
        %v612 = vmax.f32 %v498, %v601
        %v613 = vmax.f32 %v499, %v603
        %v614 = vmax.f32 %v500, %v605
        %v615 = vmax.f32 %v501, %v607
        %616 = vrot.lane.b32.xlu0 %v356, 126
        %v617 = vpop.permute.xlu0 %616
        %618 = vrot.lane.b32.xlu0 %v357, 126
        %v619 = vpop.permute.xlu0 %618
        %620 = vrot.lane.b32.xlu0 %v358, 126
        %v621 = vpop.permute.xlu0 %620
        %622 = vrot.lane.b32.xlu0 %v359, 126
        %v623 = vpop.permute.xlu0 %622
        %v628 = vmax.f32 %v514, %v617
        %v629 = vmax.f32 %v515, %v619
        %v630 = vmax.f32 %v516, %v621
        %v631 = vmax.f32 %v517, %v623
        %v632 = vand.u32 2147483647, %v290
        %v633 = vand.u32 2147483647, %v291
        %v634 = vand.u32 2147483647, %v292
        %v635 = vand.u32 2147483647, %v293
        %v636 = vand.u32 2147483647, %v294
        %v637 = vand.u32 2147483647, %v295
        %v638 = vand.u32 2147483647, %v296
        %v639 = vand.u32 2147483647, %v297
        %v640 = vsub.f32 0.0, %v632
        %v641 = vsub.f32 0.0, %v633
        %v642 = vsub.f32 0.0, %v634
        %v643 = vsub.f32 0.0, %v635
        %v644 = vsub.f32 0.0, %v636
        %v645 = vsub.f32 0.0, %v637
        %v646 = vsub.f32 0.0, %v638
        %v647 = vsub.f32 0.0, %v639
        %v648 = vmul.f32 %v640, 1.442695
        %v649 = vpow.pop %v648
        %v650 = vmul.f32 %v641, 1.442695
        %v651 = vpow.pop %v650
        %v652 = vmul.f32 %v642, 1.442695
        %v653 = vpow.pop %v652
        %v654 = vmul.f32 %v643, 1.442695
        %v655 = vpow.pop %v654
        %v656 = vmul.f32 %v644, 1.442695
        %v657 = vpow.pop %v656
        %v658 = vmul.f32 %v645, 1.442695
        %v659 = vpow.pop %v658
        %v660 = vmul.f32 %v646, 1.442695
        %v661 = vpow.pop %v660
        %v662 = vmul.f32 %v647, 1.442695
        %v663 = vpow.pop %v662
        %v664 = vadd.f32 %v649, 1.0
        %v665 = vlog2.pop %v664
        %v666 = vmul.f32 %v665, 0.6931472
        %v667 = vmul.f32 -0.5, %v649
        %v668 = vadd.f32 %v667, 1.0
        %v669 = vmul.f32 %v668, %v649
        %v670 = vand.u32 2147483647, %v649
        %vm671 = vcmp.lt.f32.partialorder %v670, 0.0004427343
        %v672 = vsel %vm671, %v669, %v666
        %v673 = vadd.f32 %v651, 1.0
        %v674 = vlog2.pop %v673
        %v675 = vmul.f32 %v674, 0.6931472
        %v676 = vmul.f32 -0.5, %v651
        %v677 = vadd.f32 %v676, 1.0
        %v678 = vmul.f32 %v677, %v651
        %v679 = vand.u32 2147483647, %v651
        %vm680 = vcmp.lt.f32.partialorder %v679, 0.0004427343
        %v681 = vsel %vm680, %v678, %v675
        %v682 = vadd.f32 %v653, 1.0
        %v683 = vlog2.pop %v682
        %v684 = vmul.f32 %v683, 0.6931472
        %v685 = vmul.f32 -0.5, %v653
        %v686 = vadd.f32 %v685, 1.0
        %v687 = vmul.f32 %v686, %v653
        %v688 = vand.u32 2147483647, %v653
        %vm689 = vcmp.lt.f32.partialorder %v688, 0.0004427343
        %v690 = vsel %vm689, %v687, %v684
        %v691 = vadd.f32 %v655, 1.0
        %v692 = vlog2.pop %v691
        %v693 = vmul.f32 %v692, 0.6931472
        %v694 = vmul.f32 -0.5, %v655
        %v695 = vadd.f32 %v694, 1.0
        %v696 = vmul.f32 %v695, %v655
        %v697 = vand.u32 2147483647, %v655
        %vm698 = vcmp.lt.f32.partialorder %v697, 0.0004427343
        %v699 = vsel %vm698, %v696, %v693
        %v700 = vadd.f32 %v657, 1.0
        %v701 = vlog2.pop %v700
        %v702 = vmul.f32 %v701, 0.6931472
        %v703 = vmul.f32 -0.5, %v657
        %v704 = vadd.f32 %v703, 1.0
        %v705 = vmul.f32 %v704, %v657
        %v706 = vand.u32 2147483647, %v657
        %vm707 = vcmp.lt.f32.partialorder %v706, 0.0004427343
        %v708 = vsel %vm707, %v705, %v702
        %v709 = vadd.f32 %v659, 1.0
        %v710 = vlog2.pop %v709
        %v711 = vmul.f32 %v710, 0.6931472
        %v712 = vmul.f32 -0.5, %v659
        %v713 = vadd.f32 %v712, 1.0
        %v714 = vmul.f32 %v713, %v659
        %v715 = vand.u32 2147483647, %v659
        %vm716 = vcmp.lt.f32.partialorder %v715, 0.0004427343
        %v717 = vsel %vm716, %v714, %v711
        %v718 = vadd.f32 %v661, 1.0
        %v719 = vlog2.pop %v718
        %v720 = vmul.f32 %v719, 0.6931472
        %v721 = vmul.f32 -0.5, %v661
        %v722 = vadd.f32 %v721, 1.0
        %v723 = vmul.f32 %v722, %v661
        %v724 = vand.u32 2147483647, %v661
        %vm725 = vcmp.lt.f32.partialorder %v724, 0.0004427343
        %v726 = vsel %vm725, %v723, %v720
        %v727 = vadd.f32 %v663, 1.0
        %v728 = vlog2.pop %v727
        %v729 = vmul.f32 %v728, 0.6931472
        %v730 = vmul.f32 -0.5, %v663
        %v731 = vadd.f32 %v730, 1.0
        %v732 = vmul.f32 %v731, %v663
        %v733 = vand.u32 2147483647, %v663
        %vm734 = vcmp.lt.f32.partialorder %v733, 0.0004427343
        %v735 = vsel %vm734, %v732, %v729
        %v736 = vmax.f32 %v290, 0.0
        %v737 = vmax.f32 %v291, 0.0
        %v738 = vmax.f32 %v292, 0.0
        %v739 = vmax.f32 %v293, 0.0
        %v740 = vmax.f32 %v294, 0.0
        %v741 = vmax.f32 %v295, 0.0
        %v742 = vmax.f32 %v296, 0.0
        %v743 = vmax.f32 %v297, 0.0
        %v744 = vadd.f32 %v736, %v672
        %v745 = vadd.f32 %v737, %v681
        %v746 = vadd.f32 %v738, %v690
        %v747 = vadd.f32 %v739, %v699
        %v748 = vadd.f32 %v740, %v708
        %v749 = vadd.f32 %v741, %v717
        %v750 = vadd.f32 %v742, %v726
        %v751 = vadd.f32 %v743, %v735
        %v752 = vsub.f32 %v744, %v290
        %v753 = vsub.f32 %v745, %v291
        %v754 = vsub.f32 %v746, %v292
        %v755 = vsub.f32 %v747, %v293
        %v756 = vsub.f32 %v748, %v294
        %v757 = vsub.f32 %v749, %v295
        %v758 = vsub.f32 %v750, %v296
        %v759 = vsub.f32 %v751, %v297
        %761 = vset.pattern.permute.xlu0 0
        %762 = vperm.xlu0 %761, %v612
        %v763 = vpop.permute.xlu0 %762
        %766 = vset.pattern.permute.xlu0 0
        %767 = vperm.xlu0 %766, %v613
        %v768 = vpop.permute.xlu0 %767
        %771 = vset.pattern.permute.xlu0 0
        %772 = vperm.xlu0 %771, %v614
        %v773 = vpop.permute.xlu0 %772
        %776 = vset.pattern.permute.xlu0 0
        %777 = vperm.xlu0 %776, %v615
        %v778 = vpop.permute.xlu0 %777
        %v780 = vmul.f32 %v763, %v560
        %v781 = vmul.f32 %v763, %v561
        %v782 = vmul.f32 %v768, %v562
        %v783 = vmul.f32 %v768, %v563
        %v784 = vmul.f32 %v773, %v564
        %v785 = vmul.f32 %v773, %v565
        %v786 = vmul.f32 %v778, %v566
        %v787 = vmul.f32 %v778, %v567
        %v788 = vsub.f32 1.0, %v560
        %v789 = vsub.f32 1.0, %v561
        %v790 = vsub.f32 1.0, %v562
        %v791 = vsub.f32 1.0, %v563
        %v792 = vsub.f32 1.0, %v564
        %v793 = vsub.f32 1.0, %v565
        %v794 = vsub.f32 1.0, %v566
        %v795 = vsub.f32 1.0, %v567
        %v796 = vmul.f32 %v763, %v788
        %v797 = vmul.f32 %v763, %v789
        %v798 = vmul.f32 %v768, %v790
        %v799 = vmul.f32 %v768, %v791
        %v800 = vmul.f32 %v773, %v792
        %v801 = vmul.f32 %v773, %v793
        %v802 = vmul.f32 %v778, %v794
        %v803 = vmul.f32 %v778, %v795
        %805 = vset.pattern.permute.xlu0 0
        %806 = vperm.xlu0 %805, %v628
        %v807 = vpop.permute.xlu0 %806
        %810 = vset.pattern.permute.xlu0 0
        %811 = vperm.xlu0 %810, %v629
        %v812 = vpop.permute.xlu0 %811
        %815 = vset.pattern.permute.xlu0 0
        %816 = vperm.xlu0 %815, %v630
        %v817 = vpop.permute.xlu0 %816
        %820 = vset.pattern.permute.xlu0 0
        %821 = vperm.xlu0 %820, %v631
        %v822 = vpop.permute.xlu0 %821
        %v824 = vmul.f32 %v807, %v592
        %v825 = vmul.f32 %v807, %v593
        %v826 = vmul.f32 %v812, %v594
        %v827 = vmul.f32 %v812, %v595
        %v828 = vmul.f32 %v817, %v596
        %v829 = vmul.f32 %v817, %v597
        %v830 = vmul.f32 %v822, %v598
        %v831 = vmul.f32 %v822, %v599
        %v832 = vadd.f32 %v796, %v824
        %v833 = vadd.f32 %v797, %v825
        %v834 = vadd.f32 %v798, %v826
        %v835 = vadd.f32 %v799, %v827
        %v836 = vadd.f32 %v800, %v828
        %v837 = vadd.f32 %v801, %v829
        %v838 = vadd.f32 %v802, %v830
        %v839 = vadd.f32 %v803, %v831
        %v840 = vmul.f32 %v780, %v752
        %v841 = vmul.f32 %v781, %v753
        %v842 = vmul.f32 %v782, %v754
        %v843 = vmul.f32 %v783, %v755
        %v844 = vmul.f32 %v784, %v756
        %v845 = vmul.f32 %v785, %v757
        %v846 = vmul.f32 %v786, %v758
        %v847 = vmul.f32 %v787, %v759
        %v848 = vadd.f32 %v840, %v842
        %v849 = vadd.f32 %v848, %v844
        %v850 = vadd.f32 %v849, %v846
        %v851 = vadd.f32 %v841, %v843
        %v852 = vadd.f32 %v851, %v845
        %v853 = vadd.f32 %v852, %v847
        %v854 = vld [vmem:[%s266] sm:$0xff]
        %v855 = vld [vmem:[%s266 + $0x8] sm:$0xff]
        %v856 = vadd.f32 %v854, %v850
        %v857 = vadd.f32 %v855, %v853
        %858 = vst [vmem:[%s266] sm:$0xff] %v856
        %859 = vst [vmem:[%s266 + $0x8] sm:$0xff] %v857
        %v860 = vadd.f32 %v780, %v782
        %v861 = vadd.f32 %v860, %v784
        %v862 = vadd.f32 %v861, %v786
        %v863 = vadd.f32 %v781, %v783
        %v864 = vadd.f32 %v863, %v785
        %v865 = vadd.f32 %v864, %v787
        %s866 = scalar_lea.vmem %s266, 16 [#allocation7]
        %v867 = vld [vmem:[%s866] sm:$0xff]
        %v868 = vld [vmem:[%s866 + $0x8] sm:$0xff]
        %v869 = vadd.f32 %v867, %v862
        %v870 = vadd.f32 %v868, %v865
        %871 = vst [vmem:[%s866] sm:$0xff] %v869
        %872 = vst [vmem:[%s866 + $0x8] sm:$0xff] %v870
        %v873 = vmul.f32 %v832, %v744
        %v874 = vmul.f32 %v833, %v745
        %v875 = vmul.f32 %v834, %v746
        %v876 = vmul.f32 %v835, %v747
        %v877 = vmul.f32 %v836, %v748
        %v878 = vmul.f32 %v837, %v749
        %v879 = vmul.f32 %v838, %v750
        %v880 = vmul.f32 %v839, %v751
        %v881 = vadd.f32 %v873, %v875
        %v882 = vadd.f32 %v881, %v877
        %v883 = vadd.f32 %v882, %v879
        %v884 = vadd.f32 %v874, %v876
        %v885 = vadd.f32 %v884, %v878
        %v886 = vadd.f32 %v885, %v880
        %s887 = scalar_lea.vmem %s266, 32 [#allocation7]
        %v888 = vld [vmem:[%s887] sm:$0xff]
        %v889 = vld [vmem:[%s887 + $0x8] sm:$0xff]
        %v890 = vadd.f32 %v888, %v883
        %v891 = vadd.f32 %v889, %v886
        %892 = vst [vmem:[%s887] sm:$0xff] %v890
        %893 = vst [vmem:[%s887 + $0x8] sm:$0xff] %v891
        %v894 = vadd.f32 %v832, %v834
        %v895 = vadd.f32 %v894, %v836
        %v896 = vadd.f32 %v895, %v838
        %v897 = vadd.f32 %v833, %v835
        %v898 = vadd.f32 %v897, %v837
        %v899 = vadd.f32 %v898, %v839
        %s900 = scalar_lea.vmem %s266, 48 [#allocation7]
        %v901 = vld [vmem:[%s900] sm:$0xff]
        %v902 = vld [vmem:[%s900 + $0x8] sm:$0xff]
        %v903 = vadd.f32 %v901, %v896
        %v904 = vadd.f32 %v902, %v899
        %905 = vst [vmem:[%s900] sm:$0xff] %v903
        %906 = vst [vmem:[%s900 + $0x8] sm:$0xff] %v904
        %s907 = sand.u32 %s127, 1
        %s908 = scalar_lea.sflag [#allocation4], %s907
        %s909 = sand.u32 %s127, 1
        %s910 = smul.addr %s909, 64
        %s911 = scalar_lea.vmem [#allocation7], %s910
        // Predicated region
        $region45: #{tpu_custom_call.1} parent=31 // pred_check
          %p912 = pneg %p137
        $region46: #{tpu_custom_call.1} parent=31 // pred_check_branch
          %914 = sbr.rel (%p912) target = $region48
        $region47: #{tpu_custom_call.1} parent=31 // pred_region
          %s916 = ssub.s32 1024, 1024
          %917 = vsyncadd %s908, %s916
          %s918 = smul.addr %s27, 8
          %s919 = smul.addr %s918, 128
          %s920 = scalar_lea.hbm %s3, %s919
          %s921 = sshll.u32 %s911, 4
          %s922 = int_to_ptr.vmem [resolvable:$true] %s921
          %927 = dma.vmem_to_hbm [thread:$0]  %s922, 1024, %s920, %s908, 256, 256, 16
        $region48: #{tpu_custom_call.1} parent=31 // pred_fallthru
          _
      $region32: #{tpu_custom_call.1} parent=5 // pred_fallthru
        _
      %p928 = scmp.le.s32.totalorder 2, %s18
      // Predicated region
      $region49: #{tpu_custom_call.1} parent=5 // pred_check
        %p929 = pneg %p928
      $region50: #{tpu_custom_call.1} parent=5 // pred_check_branch
        %931 = sbr.rel (%p929) target = $region52
      $region51: #{tpu_custom_call.1} parent=5 // pred_region
        %s932 = ssub.s32 %s18, 2
        // Predicated region
        $region53: #{tpu_custom_call.1} parent=51 // pred_check
          %p933 = pneg %p143
        $region54: #{tpu_custom_call.1} parent=51 // pred_check_branch
          %935 = sbr.rel (%p933) target = $region56
        $region55: #{tpu_custom_call.1} parent=51 // pred_region
          %s936 = sand.u32 %s128, 1
          %s937 = scalar_lea.sflag [#allocation4], %s936
          %s938 = sand.u32 %s128, 1
          %s939 = smul.addr %s938, 64
          %s940 = scalar_lea.vmem [#allocation7], %s939
          %941 = dma.done %s937, 1024
        $region56: #{tpu_custom_call.1} parent=51 // pred_fallthru
          _
      $region52: #{tpu_custom_call.1} parent=5 // pred_fallthru
        _
    $region6: #{tpu_custom_call.1} parent=1 // loop_footer
      %s22 = sadd.s32 1, %s18
    $region7: #{tpu_custom_call.1} parent=1 // loop_footer_branch
      %17 = sbr.rel target = $region3
    $region8: #{tpu_custom_call.1} parent=1 // loop_exit
      _
    %942 = vsyncpa [#allocation3], 1
    %s943 = scalar_lea.sflag [#allocation3], 1
    %944 = vsyncpa %s943, 1
    %945 = vsyncpa [#allocation6], 1
    %s946 = scalar_lea.sflag [#allocation6], 1
    %947 = vsyncpa %s946, 1
    %948 = vsyncpa [#allocation4], 1
    %s949 = scalar_lea.sflag [#allocation4], 1
    %950 = vsyncpa %s949, 1

</llo_original>
